<compile_context>
chip_gen: v5e
topology: v5e:2x2
jax: 0.10.0
libtpu: 0.0.40
codegen_flags: <defaults>
</compile_context>

<pallas_src>
import jax
import jax.numpy as jnp
from jax import lax
from jax.experimental import pallas as pl
from jax.experimental.pallas import tpu as pltpu

FEAT_IN = 10      # fc1 in_features
FEAT_OUT = 4      # output out_features

LANE = 128        # TPU lane width
CHUNK = 1024      # in-kernel compute chunk (lanes per fori_loop iteration)
MAX_TB = 64 * 1024  # batch-tile cap: ~12 MiB double-buffered VMEM, ~3.7 MB DMA/step


def _round_up(v, m):
    return ((v + m - 1) // m) * m


def _pick_batch_tile(batch):
    """Lane count per grid step: multiple of 128; once it exceeds CHUNK it is a
    multiple of CHUNK so the in-kernel chunk loop divides it exactly."""
    n = _round_up(max(int(batch), 1), LANE)
    if n <= 2 * LANE:
        return n                                   # tiny batch: one small tile
    tb = _round_up((n + 1) // 2, LANE)             # >=2 grid steps -> both v7x TCs busy
    tb = min(tb, MAX_TB)
    if tb > CHUNK:
        tb = _round_up(tb, CHUNK)
    return tb


def affine_kernel(xT_ref, w_ref, b_ref, o_ref):
    """o = W @ x + b with the batch on the 128-lane axis.

    xT_ref: (FEAT_IN, TB)        f32  input tile, batch lane-dense
    w_ref : (FEAT_OUT, FEAT_IN)  f32  collapsed weight (VMEM-resident)
    b_ref : (FEAT_OUT, 1)        f32  collapsed bias
    o_ref : (FEAT_OUT, TB)       f32
    """
    tb = o_ref.shape[-1]
    chunk = min(CHUNK, tb)            # static; tb % chunk == 0 by construction
    n_chunks = tb // chunk

    w = w_ref[...]                                              # (4, 10) — one vreg
    bias = jnp.broadcast_to(b_ref[...], (FEAT_OUT, chunk))      # hoisted out of the loop

    def body(c, carry):
        off = pl.multiple_of(c * chunk, chunk)
        x = xT_ref[:, pl.ds(off, chunk)]                        # (10, chunk)
        acc = bias
        for k in range(FEAT_IN):                                # unrolled VPU FMAs
            acc = acc + w[:, k:k + 1] * x[k:k + 1, :]
        o_ref[:, pl.ds(off, chunk)] = acc                       # full-lane stores
        return carry

    lax.fori_loop(0, n_chunks, body, 0)


def collapse_params(params):
    """Fold the three Linear layers into a single affine map (computed ONCE).

    y = ((x@w1+b1)@w2+b2)@w3+b3 == x @ (w1@w2@w3) + ((b1@w2+b2)@w3 + b3)
    Exact only because there are no activations between the layers.
    Returns W as (4, 10) and b as (4, 1) — the layout the kernel consumes.
    """
    w_c = params["w1"] @ params["w2"] @ params["w3"]                                   # (10, 4)
    b_c = (params["b1"] @ params["w2"] + params["b2"]) @ params["w3"] + params["b3"]   # (1, 4)
    return w_c.T, b_c.T


def net_forward_lane_dense(xT, w_k, b_k):
    """Lane-dense entry point: xT is (10, B) f32, returns (4, B). No transposes/pads."""
    B = xT.shape[1]
    TB = _pick_batch_tile(B)
    grid = (pl.cdiv(B, TB),)

    return pl.pallas_call(
        affine_kernel,
        out_shape=jax.ShapeDtypeStruct((FEAT_OUT, B), jnp.float32),
        grid=grid,
        in_specs=[
            pl.BlockSpec((FEAT_IN, TB), lambda i: (0, i)),         # x tile marches over batch
            pl.BlockSpec((FEAT_OUT, FEAT_IN), lambda i: (0, 0)),   # collapsed W, constant block
            pl.BlockSpec((FEAT_OUT, 1), lambda i: (0, 0)),         # collapsed bias
        ],
        out_specs=pl.BlockSpec((FEAT_OUT, TB), lambda i: (0, i)),
        compiler_params=pltpu.CompilerParams(
            dimension_semantics=("parallel",),                     # shards steps across v7x TCs
        ),
        cost_estimate=pl.CostEstimate(
            flops=2 * B * FEAT_IN * FEAT_OUT,
            transcendentals=0,
            bytes_accessed=4 * (B * FEAT_IN + B * FEAT_OUT
                                + FEAT_OUT * FEAT_IN + FEAT_OUT),
        ),
    )(xT, w_k, b_k)


def net_forward(x, w_k, b_k):
    """PyTorch-compatible interface: x (B, 10) -> (B, 4).

    The two transposes here are a separate XLA HBM pass each; callers that can
    keep activations lane-dense should use net_forward_lane_dense directly.
    """
    return net_forward_lane_dense(x.T, w_k, b_k).T


def init_params(key):
    """PyTorch nn.Linear default init: U(-1/sqrt(fan_in), 1/sqrt(fan_in)).
    Weights stored as (in_features, out_features) so the JAX reference is x @ w + b."""
    def linear(k, fan_in, fan_out):
        kw, kb = jax.random.split(k)
        bound = 1.0 / jnp.sqrt(float(fan_in))
        w = jax.random.uniform(kw, (fan_in, fan_out), jnp.float32, -bound, bound)
        b = jax.random.uniform(kb, (1, fan_out), jnp.float32, -bound, bound)
        return w, b

    k1, k2, k3 = jax.random.split(key, 3)
    w1, b1 = linear(k1, 10, 20)
    w2, b2 = linear(k2, 20, 20)
    w3, b3 = linear(k3, 20, 4)
    return {"w1": w1, "b1": b1, "w2": w2, "b2": b2, "w3": w3, "b3": b3}


def _reference(x, params):
    h = x @ params["w1"] + params["b1"]
    h = h @ params["w2"] + params["b2"]
    return h @ params["w3"] + params["b3"]


if __name__ == "__main__":
    key = jax.random.PRNGKey(0)
    k_params, k_x1, k_x2, k_x3 = jax.random.split(key, 4)

    params = init_params(k_params)
    w_k, b_k = collapse_params(params)        # collapsed once, reused by every call

    # Small batch: single partial block (10, 128) over a (10, 8) array.
    x_small = jax.random.normal(k_x1, (8, 10), dtype=jnp.float32)
    out_small = jax.block_until_ready(net_forward(x_small, w_k, b_k))
    assert out_small.shape == (8, 4)
    assert jnp.allclose(out_small, _reference(x_small, params), atol=1e-4, rtol=1e-3)

    # Non-multiple batch: 2 grid steps, partial last block, no explicit padding.
    x_mid = jax.random.normal(k_x2, (1000, 10), dtype=jnp.float32)
    out_mid = jax.block_until_ready(net_forward(x_mid, w_k, b_k))
    assert out_mid.shape == (1000, 4)
    assert jnp.allclose(out_mid, _reference(x_mid, params), atol=1e-4, rtol=1e-3)

    # Multi-chunk path: TB=2048, 2 in-kernel chunks per step, 2 grid steps.
    x_big = jax.random.normal(k_x3, (4096, 10), dtype=jnp.float32)
    out_big = jax.block_until_ready(net_forward(x_big, w_k, b_k))
    assert out_big.shape == (4096, 4)
    assert jnp.allclose(out_big, _reference(x_big, params), atol=1e-4, rtol=1e-3)

    print("KERNEL_OK")
</pallas_src>

<mosaic_0001>
module attributes {stable_mosaic.version = 11 : i64} {
  func.func @affine_kernel(%arg0: i32, %arg1: memref<10x128xf32, #tpu.memory_space<vmem>>, %arg2: memref<4x10xf32, #tpu.memory_space<vmem>>, %arg3: memref<4x1xf32, #tpu.memory_space<vmem>>, %arg4: memref<4x128xf32, #tpu.memory_space<vmem>>) attributes {dimension_semantics = [#tpu.dimension_semantics<parallel>], iteration_bounds = array<i64: 1>, scalar_prefetch = 0 : i64, scratch_operands = 0 : i64, tpu.core_type = #tpu.core_type<tc>, window_params = [{transform_indices = @transform_0, window_bounds = array<i64: 10, 128>}, {pipeline_mode = #tpu.pipeline_mode<synchronous>, transform_indices = @transform_1, window_bounds = array<i64: 4, 10>}, {pipeline_mode = #tpu.pipeline_mode<synchronous>, transform_indices = @transform_2, window_bounds = array<i64: 4, 1>}, {transform_indices = @transform_3, window_bounds = array<i64: 4, 128>}]} {
    %c0 = arith.constant 0 : index
    %c0_0 = arith.constant 0 : index
    %0 = vector.load %arg2[%c0, %c0_0] : memref<4x10xf32, #tpu.memory_space<vmem>>, vector<4x10xf32>
    %c0_1 = arith.constant 0 : index
    %c0_2 = arith.constant 0 : index
    %1 = vector.load %arg3[%c0_1, %c0_2] : memref<4x1xf32, #tpu.memory_space<vmem>>, vector<4x1xf32>
    %2 = vector.shape_cast %1 : vector<4x1xf32> to vector<4x1xf32>
    %3 = vector.broadcast %2 : vector<4x1xf32> to vector<4x128xf32>
    %c0_i32 = arith.constant 0 : i32
    %c128_i32 = arith.constant 128 : i32
    %4 = arith.muli %c0_i32, %c128_i32 : i32
    %5 = tpu.assume_multiple %4, 128 : i32
    %c0_3 = arith.constant 0 : index
    %6 = arith.index_cast %5 : i32 to index
    %7 = vector.load %arg1[%c0_3, %6] : memref<10x128xf32, #tpu.memory_space<vmem>>, vector<10x128xf32>
    %8 = vector.extract_strided_slice %0 {offsets = [0, 0], sizes = [4, 1], strides = [1, 1]} : vector<4x10xf32> to vector<4x1xf32>
    %9 = vector.extract_strided_slice %7 {offsets = [0, 0], sizes = [1, 128], strides = [1, 1]} : vector<10x128xf32> to vector<1x128xf32>
    %10 = vector.broadcast %8 : vector<4x1xf32> to vector<4x128xf32>
    %11 = vector.broadcast %9 : vector<1x128xf32> to vector<4x128xf32>
    %12 = arith.mulf %10, %11 : vector<4x128xf32>
    %13 = arith.addf %3, %12 : vector<4x128xf32>
    %14 = vector.extract_strided_slice %0 {offsets = [0, 1], sizes = [4, 1], strides = [1, 1]} : vector<4x10xf32> to vector<4x1xf32>
    %15 = vector.extract_strided_slice %7 {offsets = [1, 0], sizes = [1, 128], strides = [1, 1]} : vector<10x128xf32> to vector<1x128xf32>
    %16 = vector.broadcast %14 : vector<4x1xf32> to vector<4x128xf32>
    %17 = vector.broadcast %15 : vector<1x128xf32> to vector<4x128xf32>
    %18 = arith.mulf %16, %17 : vector<4x128xf32>
    %19 = arith.addf %13, %18 : vector<4x128xf32>
    %20 = vector.extract_strided_slice %0 {offsets = [0, 2], sizes = [4, 1], strides = [1, 1]} : vector<4x10xf32> to vector<4x1xf32>
    %21 = vector.extract_strided_slice %7 {offsets = [2, 0], sizes = [1, 128], strides = [1, 1]} : vector<10x128xf32> to vector<1x128xf32>
    %22 = vector.broadcast %20 : vector<4x1xf32> to vector<4x128xf32>
    %23 = vector.broadcast %21 : vector<1x128xf32> to vector<4x128xf32>
    %24 = arith.mulf %22, %23 : vector<4x128xf32>
    %25 = arith.addf %19, %24 : vector<4x128xf32>
    %26 = vector.extract_strided_slice %0 {offsets = [0, 3], sizes = [4, 1], strides = [1, 1]} : vector<4x10xf32> to vector<4x1xf32>
    %27 = vector.extract_strided_slice %7 {offsets = [3, 0], sizes = [1, 128], strides = [1, 1]} : vector<10x128xf32> to vector<1x128xf32>
    %28 = vector.broadcast %26 : vector<4x1xf32> to vector<4x128xf32>
    %29 = vector.broadcast %27 : vector<1x128xf32> to vector<4x128xf32>
    %30 = arith.mulf %28, %29 : vector<4x128xf32>
    %31 = arith.addf %25, %30 : vector<4x128xf32>
    %32 = vector.extract_strided_slice %0 {offsets = [0, 4], sizes = [4, 1], strides = [1, 1]} : vector<4x10xf32> to vector<4x1xf32>
    %33 = vector.extract_strided_slice %7 {offsets = [4, 0], sizes = [1, 128], strides = [1, 1]} : vector<10x128xf32> to vector<1x128xf32>
    %34 = vector.broadcast %32 : vector<4x1xf32> to vector<4x128xf32>
    %35 = vector.broadcast %33 : vector<1x128xf32> to vector<4x128xf32>
    %36 = arith.mulf %34, %35 : vector<4x128xf32>
    %37 = arith.addf %31, %36 : vector<4x128xf32>
    %38 = vector.extract_strided_slice %0 {offsets = [0, 5], sizes = [4, 1], strides = [1, 1]} : vector<4x10xf32> to vector<4x1xf32>
    %39 = vector.extract_strided_slice %7 {offsets = [5, 0], sizes = [1, 128], strides = [1, 1]} : vector<10x128xf32> to vector<1x128xf32>
    %40 = vector.broadcast %38 : vector<4x1xf32> to vector<4x128xf32>
    %41 = vector.broadcast %39 : vector<1x128xf32> to vector<4x128xf32>
    %42 = arith.mulf %40, %41 : vector<4x128xf32>
    %43 = arith.addf %37, %42 : vector<4x128xf32>
    %44 = vector.extract_strided_slice %0 {offsets = [0, 6], sizes = [4, 1], strides = [1, 1]} : vector<4x10xf32> to vector<4x1xf32>
    %45 = vector.extract_strided_slice %7 {offsets = [6, 0], sizes = [1, 128], strides = [1, 1]} : vector<10x128xf32> to vector<1x128xf32>
    %46 = vector.broadcast %44 : vector<4x1xf32> to vector<4x128xf32>
    %47 = vector.broadcast %45 : vector<1x128xf32> to vector<4x128xf32>
    %48 = arith.mulf %46, %47 : vector<4x128xf32>
    %49 = arith.addf %43, %48 : vector<4x128xf32>
    %50 = vector.extract_strided_slice %0 {offsets = [0, 7], sizes = [4, 1], strides = [1, 1]} : vector<4x10xf32> to vector<4x1xf32>
    %51 = vector.extract_strided_slice %7 {offsets = [7, 0], sizes = [1, 128], strides = [1, 1]} : vector<10x128xf32> to vector<1x128xf32>
    %52 = vector.broadcast %50 : vector<4x1xf32> to vector<4x128xf32>
    %53 = vector.broadcast %51 : vector<1x128xf32> to vector<4x128xf32>
    %54 = arith.mulf %52, %53 : vector<4x128xf32>
    %55 = arith.addf %49, %54 : vector<4x128xf32>
    %56 = vector.extract_strided_slice %0 {offsets = [0, 8], sizes = [4, 1], strides = [1, 1]} : vector<4x10xf32> to vector<4x1xf32>
    %57 = vector.extract_strided_slice %7 {offsets = [8, 0], sizes = [1, 128], strides = [1, 1]} : vector<10x128xf32> to vector<1x128xf32>
    %58 = vector.broadcast %56 : vector<4x1xf32> to vector<4x128xf32>
    %59 = vector.broadcast %57 : vector<1x128xf32> to vector<4x128xf32>
    %60 = arith.mulf %58, %59 : vector<4x128xf32>
    %61 = arith.addf %55, %60 : vector<4x128xf32>
    %62 = vector.extract_strided_slice %0 {offsets = [0, 9], sizes = [4, 1], strides = [1, 1]} : vector<4x10xf32> to vector<4x1xf32>
    %63 = vector.extract_strided_slice %7 {offsets = [9, 0], sizes = [1, 128], strides = [1, 1]} : vector<10x128xf32> to vector<1x128xf32>
    %64 = vector.broadcast %62 : vector<4x1xf32> to vector<4x128xf32>
    %65 = vector.broadcast %63 : vector<1x128xf32> to vector<4x128xf32>
    %66 = arith.mulf %64, %65 : vector<4x128xf32>
    %67 = arith.addf %61, %66 : vector<4x128xf32>
    %c0_4 = arith.constant 0 : index
    %68 = arith.index_cast %5 : i32 to index
    %69 = vector.load %arg4[%c0_4, %68] : memref<4x128xf32, #tpu.memory_space<vmem>>, vector<4x128xf32>
    tpu.vector_store %arg4[%c0_4, %68], %67 {strides = array<i32>} : memref<4x128xf32, #tpu.memory_space<vmem>>, vector<4x128xf32>,
    %c1_i32 = arith.constant 1 : i32
    return
  }
  func.func @transform_0(%arg0: i32) -> (i32, i32) {
    %c0_i32 = arith.constant 0 : i32
    %c0_i32_0 = arith.constant 0 : i32
    return %c0_i32, %arg0 : i32, i32
  }
  func.func @transform_1(%arg0: i32) -> (i32, i32) {
    %c0_i32 = arith.constant 0 : i32
    %c0_i32_0 = arith.constant 0 : i32
    %c0_i32_1 = arith.constant 0 : i32
    return %c0_i32, %c0_i32_0 : i32, i32
  }
  func.func @transform_2(%arg0: i32) -> (i32, i32) {
    %c0_i32 = arith.constant 0 : i32
    %c0_i32_0 = arith.constant 0 : i32
    %c0_i32_1 = arith.constant 0 : i32
    return %c0_i32, %c0_i32_0 : i32, i32
  }
  func.func @transform_3(%arg0: i32) -> (i32, i32) {
    %c0_i32 = arith.constant 0 : i32
    %c0_i32_0 = arith.constant 0 : i32
    return %c0_i32, %arg0 : i32, i32
  }
}

</mosaic_0001>

<llo_original>
// kernel: tpu_custom_call.1
$region0: #{tpu_custom_call.1}
  #allocation0 [shape = 'u32[]', space=smem, size = 0x4, offset = 0x4, fixed_abs, tag = 'smem constant byte address 0x4 - core index']
  #allocation1 [shape = 'u32[72,128]{1,0:T(1,128)}', space=vmem, size = 0x9000, scoped, tag = 'internal scratch']
  %s0 = inlined_call_operand.vmem [shape: f32[10,8], index: 0, kind: input, shape index: {}]
  %s1 = inlined_call_operand.vmem [shape: f32[4,10], index: 1, kind: input, shape index: {}]
  %s2 = inlined_call_operand.vmem [shape: f32[4,1], index: 2, kind: input, shape index: {}]
  %s3 = inlined_call_operand.hbm [shape: f32[4,8], index: 3, kind: output, shape index: {}]
  %s4 = sld [smem:[#allocation0]]
  $region22: #{tpu_custom_call.1} parent=0
    _
  %s6 = ssub.s32 1, %s4
  %s7 = scalar_select 0, %s6, %s4
  $region1: #{tpu_custom_call.1} parent=0
    #allocation2 [shape = 'u8[2048]{0}', space=vmem, size = 0x800, scoped, tag = 'output window, operand 0, single buffered']
    #allocation3 [shape = 's32[1]{0}', space=sflag, size = 0x4, scoped, tag = 'scoped memory for tpu_custom_call.1']
    %8 = vsyncpa [#allocation3], 0
    // Predicated region
    $region2: #{tpu_custom_call.1} parent=1 // pred_check
      _
    $region3: #{tpu_custom_call.1} parent=1 // pred_check_branch
      %10 = sbr.rel (0) target = $region5
    $region4: #{tpu_custom_call.1} parent=1 // pred_region
      _
    $region5: #{tpu_custom_call.1} parent=1 // pred_fallthru
      _
    // Predicated region
    $region6: #{tpu_custom_call.1} parent=1 // pred_check
      _
    $region7: #{tpu_custom_call.1} parent=1 // pred_check_branch
      %12 = sbr.rel (0) target = $region9
    $region8: #{tpu_custom_call.1} parent=1 // pred_region
      _
    $region9: #{tpu_custom_call.1} parent=1 // pred_fallthru
      _
    // Predicated region
    $region10: #{tpu_custom_call.1} parent=1 // pred_check
      _
    $region11: #{tpu_custom_call.1} parent=1 // pred_check_branch
      %14 = sbr.rel (0) target = $region13
    $region12: #{tpu_custom_call.1} parent=1 // pred_region
      _
    $region13: #{tpu_custom_call.1} parent=1 // pred_fallthru
      _
    %v15 = vld [vmem:[%s1] sm:$0xf]
    %v16 = vld [vmem:[%s2] sm:$0xf]
    %18 = vset.pattern.permute.xlu0 0
    %19 = vperm.xlu0 %18, %v16
    %v20 = vpop.permute.xlu0 %19
    %v22 = vld [vmem:[%s0] sm:$0xff]
    %v23 = vld [vmem:[%s0 + $0x8] sm:$0x3]
    %25 = vset.pattern.permute.xlu0 0
    %26 = vperm.xlu0 %25, %v15
    %v27 = vpop.permute.xlu0 %26
    %v29 = vperm.slane %v22, 0
    %v30 = vmul.f32 %v27, %v29
    %v31 = vadd.f32 %v20, %v30
    %32 = vset.pattern.permute.xlu0 1
    %33 = vperm.xlu0 %32, %v15
    %v34 = vpop.permute.xlu0 %33
    %v36 = vperm.slane %v22, 1
    %v37 = vmul.f32 %v34, %v36
    %v38 = vadd.f32 %v31, %v37
    %39 = vset.pattern.permute.xlu0 2
    %40 = vperm.xlu0 %39, %v15
    %v41 = vpop.permute.xlu0 %40
    %v43 = vperm.slane %v22, 2
    %v44 = vmul.f32 %v41, %v43
    %v45 = vadd.f32 %v38, %v44
    %46 = vset.pattern.permute.xlu0 3
    %47 = vperm.xlu0 %46, %v15
    %v48 = vpop.permute.xlu0 %47
    %v50 = vperm.slane %v22, 3
    %v51 = vmul.f32 %v48, %v50
    %v52 = vadd.f32 %v45, %v51
    %53 = vset.pattern.permute.xlu0 4
    %54 = vperm.xlu0 %53, %v15
    %v55 = vpop.permute.xlu0 %54
    %v57 = vperm.slane %v22, 4
    %v58 = vmul.f32 %v55, %v57
    %v59 = vadd.f32 %v52, %v58
    %60 = vset.pattern.permute.xlu0 5
    %61 = vperm.xlu0 %60, %v15
    %v62 = vpop.permute.xlu0 %61
    %v64 = vperm.slane %v22, 5
    %v65 = vmul.f32 %v62, %v64
    %v66 = vadd.f32 %v59, %v65
    %67 = vset.pattern.permute.xlu0 6
    %68 = vperm.xlu0 %67, %v15
    %v69 = vpop.permute.xlu0 %68
    %v71 = vperm.slane %v22, 6
    %v72 = vmul.f32 %v69, %v71
    %v73 = vadd.f32 %v66, %v72
    %74 = vset.pattern.permute.xlu0 7
    %75 = vperm.xlu0 %74, %v15
    %v76 = vpop.permute.xlu0 %75
    %v78 = vperm.slane %v22, 7
    %v79 = vmul.f32 %v76, %v78
    %v80 = vadd.f32 %v73, %v79
    %81 = vset.pattern.permute.xlu0 8
    %82 = vperm.xlu0 %81, %v15
    %v83 = vpop.permute.xlu0 %82
    %v85 = vperm.slane %v23, 0
    %v86 = vmul.f32 %v83, %v85
    %v87 = vadd.f32 %v80, %v86
    %88 = vset.pattern.permute.xlu0 9
    %89 = vperm.xlu0 %88, %v15
    %v90 = vpop.permute.xlu0 %89
    %v92 = vperm.slane %v23, 1
    %v93 = vmul.f32 %v90, %v92
    %v94 = vadd.f32 %v87, %v93
    %95 = vst [vmem:[#allocation2] sm:$0xf] %v94
    // Predicated region
    $region14: #{tpu_custom_call.1} parent=1 // pred_check
      _
    $region15: #{tpu_custom_call.1} parent=1 // pred_check_branch
      %97 = sbr.rel (0) target = $region17
    $region16: #{tpu_custom_call.1} parent=1 // pred_region
      %99 = vsyncadd [#allocation3], 0
      %s101 = sshll.u32 [#allocation2], 4
      %s102 = int_to_ptr.vmem [resolvable:$true] %s101
      %s103 = sshll.u32 %s3, 4
      %s104 = int_to_ptr.hbm [resolvable:$true] %s103
      %106 = dma.vmem_to_hbm [thread:$0]  %s102, 64, %s104, [#allocation3]
    $region17: #{tpu_custom_call.1} parent=1 // pred_fallthru
      _
    // Predicated region
    $region18: #{tpu_custom_call.1} parent=1 // pred_check
      _
    $region19: #{tpu_custom_call.1} parent=1 // pred_check_branch
      %108 = sbr.rel (0) target = $region21
    $region20: #{tpu_custom_call.1} parent=1 // pred_region
      %110 = dma.done [#allocation3], 64
    $region21: #{tpu_custom_call.1} parent=1 // pred_fallthru
      _
    %111 = vsyncpa [#allocation3], 1

</llo_original>
